<compile_context>
chip_gen: v5e
topology: v5e:2x2
jax: 0.10.0
libtpu: 0.0.40
codegen_flags: <defaults>
</compile_context>

<pallas_src>
import numpy as np
import jax
import jax.numpy as jnp
from jax import lax
from jax.experimental import pallas as pl
from jax.experimental.pallas import tpu as pltpu

try:
    from scipy.optimize import linear_sum_assignment as _scipy_lsa
except Exception:  # pragma: no cover - scipy optional
    _scipy_lsa = None


# -----------------------------------------------------------------------------
# Tile / VMEM sizing helpers
# -----------------------------------------------------------------------------
def _round_up(n, m):
    return -(-n // m) * m


def _vmem_capacity_bytes():
    try:
        return int(pltpu.get_tpu_info().vmem_capacity_bytes)   # 128 MiB v5e/v6e, 64 MiB v7x
    except Exception:
        return 64 << 20


def _pick_q_split(B, Q):
    """Split Q when the batch alone cannot feed both TensorCores (v7x has 2 TCs/chip)."""
    if B >= 2 or Q < 16:
        return 1
    for nq in (2, 4):
        if Q % nq == 0 and (Q // nq) % 8 == 0:
            return nq
    return 1


def _pick_hw_tiling(HW, tq, T, x_bytes, t_bytes, n_buf, max_hw_tile=None):
    """Return (tk, HW_padded): a large 128-aligned HW tile and the padded extent it divides."""
    cap = _vmem_capacity_bytes()
    budget = cap // 3
    # Bytes of VMEM per HW column: pipelined x / t tiles + the stacked bf16 LHS scratch.
    per_col = (n_buf * (_round_up(tq, 8) * x_bytes + _round_up(T + 1, 8) * t_bytes)
               + _round_up(2 * tq + 1, 16) * 2)
    max_tk = max(128, ((budget - (2 << 20)) // max(per_col, 1)) // 128 * 128)
    if max_hw_tile is not None:
        max_tk = max(128, min(max_tk, _round_up(int(max_hw_tile), 128)))
    if HW <= max_tk:                                  # single tile; pad HW up to a lane multiple
        hwp = _round_up(HW, 128)
        return hwp, hwp
    # Pick tk in [max_tk/2, max_tk] (multiples of 128) minimising HW padding.
    best_tk, best_pad = max_tk, (-HW) % max_tk
    cand = max_tk - 128
    while cand >= max(128, max_tk // 2) and best_pad > 0:
        pad = (-HW) % cand
        if pad < best_pad:
            best_tk, best_pad = cand, pad
        cand -= 128
    return best_tk, HW + best_pad


def _vmem_limit_bytes(tq, T, C, tk, x_bytes, t_bytes, n_buf):
    f32 = 4
    r8 = lambda n: _round_up(n, 8)
    r128 = lambda n: _round_up(n, 128)
    tiles = n_buf * (r8(tq) * tk * x_bytes + r8(T + 1) * tk * t_bytes)
    stack = _round_up(2 * tq + 1, 16) * tk * 2                      # bf16 stacked LHS scratch
    accs = f32 * (r8(2 * tq + 1) + r8(tq)) * r128(T + 1)            # f32 accumulators
    small = 2 * f32 * (r8(tq) * r128(C) + r8(T) * r128(C) + r8(tq) * r128(T))
    need = tiles + stack + accs + small
    cap = _vmem_capacity_bytes()
    return int(min(max(need + (4 << 20), 16 << 20), int(0.7 * cap)))


def _hw_block_spec(block_shape, index_map, n_buf):
    """BlockSpec with optional >2-deep pipelining, falling back to the default double buffer."""
    if n_buf is not None and n_buf > 2 and hasattr(pl, "Buffered"):
        try:
            return pl.BlockSpec(block_shape, index_map, pipeline_mode=pl.Buffered(n_buf))
        except TypeError:
            pass
    return pl.BlockSpec(block_shape, index_map)


# -----------------------------------------------------------------------------
# Pallas kernel: per-batch cost matrix, HW reduction tiled as the last grid axis
# -----------------------------------------------------------------------------
def compute_cost_matrices(pred_logits, pred_masks_flat, tgt_onehot, tgt_masks_flat,
                          class_weight, mask_weight, dice_weight,
                          max_hw_tile=None, multibuffer=3):
    B, Q, C = pred_logits.shape
    T = tgt_onehot.shape[1]
    HW = pred_masks_flat.shape[-1]

    n_q = _pick_q_split(B, Q)
    tq = Q // n_q

    x_bytes = pred_masks_flat.dtype.itemsize
    t_bytes = tgt_masks_flat.dtype.itemsize
    n_buf = multibuffer if (multibuffer and multibuffer > 2) else 2
    tk, HWp = _pick_hw_tiling(HW, tq, T, x_bytes, t_bytes, n_buf, max_hw_tile)
    n_hw = HWp // tk

    # Append a constant ones row to the target masks so the per-row sums of sigmoid(x),
    # softplus(x) and t all fall out of the MXU (extra output column / row) instead of
    # per-tile XLU lane reductions.
    ones_row = jnp.ones((B, 1, HW), dtype=tgt_masks_flat.dtype)
    t_aug = jnp.concatenate([tgt_masks_flat, ones_row], axis=1)          # (B, T+1, HW)

    x_in = pred_masks_flat
    if HWp != HW:
        # Pad the reduction axis with a very negative logit (sigmoid/softplus exactly 0)
        # and zero target columns, so no analytic correction is needed in-kernel.
        x_in = jnp.pad(x_in, ((0, 0), (0, 0), (0, HWp - HW)), constant_values=-1e4)
        t_aug = jnp.pad(t_aug, ((0, 0), (0, 0), (0, HWp - HW)), constant_values=0)

    cw = float(class_weight)
    mw = float(mask_weight)
    dw = float(dice_weight)
    inv_hw = 1.0 / float(HW)        # normalize by the *original* pixel count

    def kernel(logits_ref, onehot_ref, x_ref, t_ref, cost_ref,
               stack_ref, acc_stk, acc_xt):
        k = pl.program_id(2)

        @pl.when(k == 0)
        def _init():
            acc_stk[...] = jnp.zeros_like(acc_stk)
            acc_xt[...] = jnp.zeros_like(acc_xt)
            stack_ref[2 * tq:2 * tq + 1, :] = jnp.ones((1, tk), jnp.bfloat16)

        x32 = x_ref[0].astype(jnp.float32)            # (tq, tk) mask logits
        t_bf = t_ref[0].astype(jnp.bfloat16)          # (T+1, tk) binary masks + ones row

        # 2 EUP transcendentals per element (was 3): tanh gives sigmoid, log gives softplus.
        th = jnp.tanh(0.5 * x32)
        sig = 0.5 + 0.5 * th                                            # sigmoid(x)
        softplus = jnp.maximum(x32, 0.0) - jnp.log(0.5 + 0.5 * jnp.abs(th))

        # Stacked bf16 LHS holds only *computed* quantities; raw x is dotted directly
        # from the input tile (no extra copy through the vector-store slot).
        stack_ref[0:tq, :] = sig.astype(jnp.bfloat16)
        stack_ref[tq:2 * tq, :] = softplus.astype(jnp.bfloat16)

        dims = (((1,), (1,)), ((), ()))
        # [sig ; softplus ; 1] . [t ; 1]^T : one bf16 MXU pass -> sig.t^T plus the
        # row-sums of sigmoid(x), softplus(x) and t in the extra column / row.
        acc_stk[...] += lax.dot_general(stack_ref[...], t_bf, dimension_numbers=dims,
                                        preferred_element_type=jnp.float32)
        # x . [t ; 1]^T (bf16 operands, f32 accumulation).
        acc_xt[...] += lax.dot_general(x32.astype(jnp.bfloat16), t_bf,
                                       dimension_numbers=dims,
                                       preferred_element_type=jnp.float32)

        @pl.when(k == pl.num_programs(2) - 1)
        def _finalize():
            st = acc_stk[0:tq, 0:T]                     # sigmoid(x) . t^T        (tq, T)
            sig_row = acc_stk[0:tq, T:T + 1]            # rowsum(sigmoid(x))      (tq, 1)
            sp_row = acc_stk[tq:2 * tq, T:T + 1]        # rowsum(softplus(x))     (tq, 1)
            t_row = acc_stk[2 * tq:2 * tq + 1, 0:T]     # rowsum(t)               (1, T)
            xt = acc_xt[0:tq, 0:T]                      # x . t^T                 (tq, T)

            # sigmoid-BCE mask cost, algebraically reduced:
            #  (softplus(-x).t^T + softplus(x).(1-t)^T)/HW == (rowsum(softplus(x)) - x.t^T)/HW
            cost_mask = (sp_row - xt) * inv_hw
            cost_dice = 1.0 - (2.0 * st + 1.0) / (sig_row + t_row + 1.0)

            # class cost: -softmax(logits)[:, labels] via a tiny one-hot matmul (once per tile).
            logits = logits_ref[0].astype(jnp.float32)
            onehot = onehot_ref[0].astype(jnp.float32)
            m = jnp.max(logits, axis=-1, keepdims=True)
            ez = jnp.exp(logits - m)
            prob = ez / jnp.sum(ez, axis=-1, keepdims=True)
            cost_class = -lax.dot_general(prob, onehot, dimension_numbers=dims,
                                          preferred_element_type=jnp.float32)

            cost_ref[0] = (cw * cost_class + mw * cost_mask
                           + dw * cost_dice).astype(cost_ref.dtype)

    def build(n_buf_eff):
        grid_spec = pltpu.PrefetchScalarGridSpec(
            num_scalar_prefetch=0,
            grid=(B, n_q, n_hw),                  # HW reduction is the last ("arbitrary") axis
            in_specs=[
                pl.BlockSpec((1, tq, C), lambda b, q, k: (b, q, 0)),           # logits
                pl.BlockSpec((1, T, C), lambda b, q, k: (b, 0, 0)),            # one-hot labels
                _hw_block_spec((1, tq, tk), lambda b, q, k: (b, q, k), n_buf_eff),   # mask logits
                _hw_block_spec((1, T + 1, tk), lambda b, q, k: (b, 0, k), n_buf_eff),  # tgt masks
            ],
            out_specs=pl.BlockSpec((1, tq, T), lambda b, q, k: (b, q, 0)),
            scratch_shapes=[
                pltpu.VMEM((2 * tq + 1, tk), jnp.bfloat16),   # stacked [sig; softplus; 1] LHS
                pltpu.VMEM((2 * tq + 1, T + 1), jnp.float32),  # stacked-dot accumulator
                pltpu.VMEM((tq, T + 1), jnp.float32),          # x.t^T accumulator
            ],
        )
        return pl.pallas_call(
            kernel,
            out_shape=jax.ShapeDtypeStruct((B, Q, T), jnp.float32),
            grid_spec=grid_spec,
            compiler_params=pltpu.CompilerParams(
                dimension_semantics=("parallel", "parallel", "arbitrary"),
                vmem_limit_bytes=_vmem_limit_bytes(tq, T, C, tk, x_bytes, t_bytes, n_buf_eff)),
        )

    args = (pred_logits, tgt_onehot, x_in, t_aug)
    if n_buf > 2:
        try:
            return jax.block_until_ready(build(n_buf)(*args))
        except Exception:
            pass                                   # fall back to default double buffering
    return build(2)(*args)


# -----------------------------------------------------------------------------
# Host-side Hungarian assignment (no Pallas equivalent: sequential algorithm)
# -----------------------------------------------------------------------------
def _hungarian_square(cost):
    """Jonker-Volgenant style Hungarian on a square cost matrix (n x n). Fallback only."""
    n = cost.shape[0]
    INF = 1e18
    u = np.zeros(n + 1)
    v = np.zeros(n + 1)
    p = np.zeros(n + 1, dtype=np.int64)
    for i in range(1, n + 1):
        p[0] = i
        j0 = 0
        minv = np.full(n + 1, INF)
        used = np.zeros(n + 1, dtype=bool)
        way = np.zeros(n + 1, dtype=np.int64)
        while True:
            used[j0] = True
            i0 = p[j0]
            delta = INF
            j1 = 0
            for j in range(1, n + 1):
                if not used[j]:
                    cur = cost[i0 - 1, j - 1] - u[i0] - v[j]
                    if cur < minv[j]:
                        minv[j] = cur
                        way[j] = j0
                    if minv[j] < delta:
                        delta = minv[j]
                        j1 = j
            for j in range(n + 1):
                if used[j]:
                    u[p[j]] += delta
                    v[j] -= delta
                else:
                    minv[j] -= delta
            j0 = j1
            if p[j0] == 0:
                break
        while j0:
            j1 = way[j0]
            p[j0] = p[j1]
            j0 = j1
    row_of_col = np.full(n, -1, dtype=np.int64)
    for j in range(1, n + 1):
        if p[j] > 0:
            row_of_col[j - 1] = p[j] - 1
    return row_of_col


def linear_sum_assignment_with_nan(cost_matrix):
    cost_matrix = np.asarray(cost_matrix, dtype=np.float64)
    nan = np.isnan(cost_matrix).any()
    nan_all = np.isnan(cost_matrix).all()
    empty = cost_matrix.size == 0
    if not empty:
        if nan_all:
            print('Matrix contains all NaN values!')
        elif nan:
            print('Matrix contains NaN values!')
        if nan_all:
            cost_matrix = np.empty(shape=(0, 0))
        elif nan:
            cost_matrix[np.isnan(cost_matrix)] = 100
    if cost_matrix.size == 0:
        return (np.zeros((0,), dtype=np.int64), np.zeros((0,), dtype=np.int64))
    if _scipy_lsa is not None:                        # fast C implementation when available
        rows, cols = _scipy_lsa(cost_matrix)
        return np.asarray(rows, dtype=np.int64), np.asarray(cols, dtype=np.int64)
    nq, nt = cost_matrix.shape
    n = max(nq, nt)
    padded = np.zeros((n, n), dtype=np.float64)       # square-pad preserves the LSA optimum
    padded[:nq, :nt] = cost_matrix
    row_of_col = _hungarian_square(padded)
    rows, cols = [], []
    for j in range(nt):
        i = row_of_col[j]
        if 0 <= i < nq:
            rows.append(i)
            cols.append(j)
    rows = np.asarray(rows, dtype=np.int64)
    cols = np.asarray(cols, dtype=np.int64)
    order = np.argsort(rows)
    return rows[order], cols[order]


# -----------------------------------------------------------------------------
# Matcher wrapper (mirrors HungarianMatcher.memory_efficient_forward, num_points=0)
# -----------------------------------------------------------------------------
class HungarianMatcherPallas:
    def __init__(self, class_weight=1.0, mask_weight=1.0, dice_weight=1.0, num_points=0):
        assert num_points == 0  # TODO(synk): point_sample path (num_points > 0) not implemented
        self.class_weight = float(class_weight)
        self.mask_weight = float(mask_weight)
        self.dice_weight = float(dice_weight)

    def __call__(self, pred_logits, pred_masks, tgt_labels, tgt_masks, max_hw_tile=None):
        B, Q, C = pred_logits.shape
        T = tgt_labels.shape[1]
        HW = pred_masks.shape[-2] * pred_masks.shape[-1]

        idx_dtype = jnp.int64 if jax.config.jax_enable_x64 else jnp.int32
        if T == 0:
            empty = jnp.zeros((0,), idx_dtype)
            return [(empty, empty)] * B, jnp.zeros((B, Q, 0), jnp.float32)

        # Big tensors stay in their native dtype (no host-side astype pass); the kernel
        # casts per tile (binary t is exact in bf16; x feeds the MXU as bf16).
        out_mask = pred_masks.reshape(B, Q, HW)
        tgt_mask = tgt_masks.reshape(B, T, HW)
        # NOTE: labels outside [0, C) silently yield a zero one-hot row (cost_class 0),
        # unlike torch gather which would raise.
        onehot = jax.nn.one_hot(tgt_labels, C, dtype=jnp.float32)     # (B, T, C)

        cost = compute_cost_matrices(
            pred_logits, out_mask, onehot, tgt_mask,
            self.class_weight, self.mask_weight, self.dice_weight,
            max_hw_tile=max_hw_tile)
        cost_np = np.asarray(jax.block_until_ready(cost))

        # TODO(synk): when matching a stream of batches, overlap the host-side LSA below
        # with the next batch's cost kernel (device dispatch is already asynchronous).
        indices = []
        for b in range(B):
            i, j = linear_sum_assignment_with_nan(cost_np[b])
            indices.append((jnp.asarray(i, idx_dtype), jnp.asarray(j, idx_dtype)))
        return indices, cost


# -----------------------------------------------------------------------------
# Reference (pure jnp) cost matrix, for a sanity check
# -----------------------------------------------------------------------------
def _ref_cost(pred_logits, pred_masks, tgt_labels, tgt_masks, cw, mw, dw):
    B, Q, C = pred_logits.shape
    T = tgt_labels.shape[1]
    HW = pred_masks.shape[-2] * pred_masks.shape[-1]
    out = []
    for b in range(B):
        prob = jax.nn.softmax(pred_logits[b].astype(jnp.float32), -1)
        cost_class = -prob[:, tgt_labels[b]]
        x = pred_masks[b].reshape(Q, HW).astype(jnp.float32)
        t = tgt_masks[b].reshape(T, HW).astype(jnp.float32)
        pos = jax.nn.softplus(-x)
        neg = jax.nn.softplus(x)
        cost_mask = (pos @ t.T + neg @ (1.0 - t).T) / HW
        sig = jax.nn.sigmoid(x)
        num = 2.0 * (sig @ t.T)
        den = sig.sum(-1)[:, None] + t.sum(-1)[None, :]
        cost_dice = 1.0 - (num + 1.0) / (den + 1.0)
        out.append(cw * cost_class + mw * cost_mask + dw * cost_dice)
    return jnp.stack(out)


# -----------------------------------------------------------------------------
if __name__ == "__main__":
    matcher = HungarianMatcherPallas(class_weight=1.0, mask_weight=1.0,
                                     dice_weight=1.0, num_points=0)

    def run_case(seed, B, Q, C, H, W, T, max_hw_tile=None):
        key = jax.random.PRNGKey(seed)
        k1, k2, k3, k4 = jax.random.split(key, 4)
        pred_logits = jax.random.normal(k1, (B, Q, C), jnp.float32)
        pred_masks = jax.random.normal(k2, (B, Q, H, W), jnp.float32)
        tgt_labels = jax.random.randint(k3, (B, T), 0, C, jnp.int32)
        tgt_masks = (jax.random.uniform(k4, (B, T, H, W)) > 0.5).astype(jnp.float32)

        indices, cost = matcher(pred_logits, pred_masks, tgt_labels, tgt_masks,
                                max_hw_tile=max_hw_tile)
        jax.block_until_ready(cost)
        for i, j in indices:
            jax.block_until_ready(i)
            jax.block_until_ready(j)

        # Sanity check against a pure-JAX reference (tolerance covers bf16 MXU operands).
        ref = jax.block_until_ready(
            _ref_cost(pred_logits, pred_masks, tgt_labels, tgt_masks, 1.0, 1.0, 1.0))
        np.testing.assert_allclose(np.asarray(cost), np.asarray(ref),
                                   rtol=1e-3, atol=1e-2)

    # Case 1: single HW tile, batch-parallel grid.
    run_case(0, B=2, Q=8, C=5, H=16, W=16, T=4)
    # Case 2: exercises HW tiling + padding (H*W not a lane multiple) and the Q split
    # used to feed both TensorCores when B == 1.
    run_case(1, B=1, Q=16, C=5, H=18, W=18, T=3, max_hw_tile=128)

    print("KERNEL_OK")
</pallas_src>

<mosaic_0001>
module attributes {stable_mosaic.version = 11 : i64} {
  func.func @kernel(%arg0: i32, %arg1: i32, %arg2: i32, %arg3: memref<1x8x5xf32, #tpu.memory_space<vmem>>, %arg4: memref<1x4x5xf32, #tpu.memory_space<vmem>>, %arg5: memref<1x8x256xf32, #tpu.memory_space<vmem>>, %arg6: memref<1x5x256xf32, #tpu.memory_space<vmem>>, %arg7: memref<1x8x4xf32, #tpu.memory_space<vmem>>, %arg8: memref<17x256xbf16, #tpu.memory_space<vmem>>, %arg9: memref<17x5xf32, #tpu.memory_space<vmem>>, %arg10: memref<8x5xf32, #tpu.memory_space<vmem>>) attributes {dimension_semantics = [#tpu.dimension_semantics<parallel>, #tpu.dimension_semantics<parallel>, #tpu.dimension_semantics<arbitrary>], iteration_bounds = array<i64: 2, 1, 1>, scalar_prefetch = 0 : i64, scratch_operands = 3 : i64, tpu.core_type = #tpu.core_type<tc>, window_params = [{transform_indices = @transform_0, window_bounds = array<i64: 1, 8, 5>}, {transform_indices = @transform_1, window_bounds = array<i64: 1, 4, 5>}, {transform_indices = @transform_2, window_bounds = array<i64: 1, 8, 256>}, {transform_indices = @transform_3, window_bounds = array<i64: 1, 5, 256>}, {transform_indices = @transform_4, window_bounds = array<i64: 1, 8, 4>}]} {
    %c0_i32 = arith.constant 0 : i32
    %0 = arith.cmpi eq, %arg2, %c0_i32 : i32
    %1 = arith.extui %0 : i1 to i32
    %c0_i32_0 = arith.constant 0 : i32
    %2 = arith.cmpi ne, %1, %c0_i32_0 : i32
    scf.if %2 {
      %cst_28 = arith.constant 0.000000e+00 : f32
      %41 = vector.broadcast %cst_28 : f32 to vector<17x5xf32>
      %c0_29 = arith.constant 0 : index
      %c0_30 = arith.constant 0 : index
      %42 = vector.load %arg9[%c0_29, %c0_30] : memref<17x5xf32, #tpu.memory_space<vmem>>, vector<17x5xf32>
      tpu.vector_store %arg9[%c0_29, %c0_30], %41 {strides = array<i32>} : memref<17x5xf32, #tpu.memory_space<vmem>>, vector<17x5xf32>,
      %cst_31 = arith.constant 0.000000e+00 : f32
      %43 = vector.broadcast %cst_31 : f32 to vector<8x5xf32>
      %c0_32 = arith.constant 0 : index
      %c0_33 = arith.constant 0 : index
      %44 = vector.load %arg10[%c0_32, %c0_33] : memref<8x5xf32, #tpu.memory_space<vmem>>, vector<8x5xf32>
      tpu.vector_store %arg10[%c0_32, %c0_33], %43 {strides = array<i32>} : memref<8x5xf32, #tpu.memory_space<vmem>>, vector<8x5xf32>,
      %cst_34 = arith.constant 1.000000e+00 : bf16
      %45 = vector.broadcast %cst_34 : bf16 to vector<1x256xbf16>
      %c16 = arith.constant 16 : index
      %c0_35 = arith.constant 0 : index
      %46 = vector.load %arg8[%c16, %c0_35] : memref<17x256xbf16, #tpu.memory_space<vmem>>, vector<1x256xbf16>
      tpu.vector_store %arg8[%c16, %c0_35], %45 {strides = array<i32>} : memref<17x256xbf16, #tpu.memory_space<vmem>>, vector<1x256xbf16>,
    } else {
    }
    %c0 = arith.constant 0 : index
    %c0_1 = arith.constant 0 : index
    %c0_2 = arith.constant 0 : index
    %3 = vector.load %arg5[%c0, %c0_1, %c0_2] : memref<1x8x256xf32, #tpu.memory_space<vmem>>, vector<1x8x256xf32>
    %4 = vector.shape_cast %3 : vector<1x8x256xf32> to vector<8x256xf32>
    %c0_3 = arith.constant 0 : index
    %c0_4 = arith.constant 0 : index
    %c0_5 = arith.constant 0 : index
    %5 = vector.load %arg6[%c0_3, %c0_4, %c0_5] : memref<1x5x256xf32, #tpu.memory_space<vmem>>, vector<1x5x256xf32>
    %6 = vector.shape_cast %5 : vector<1x5x256xf32> to vector<5x256xf32>
    %7 = arith.truncf %6 : vector<5x256xf32> to vector<5x256xbf16>
    %cst = arith.constant 5.000000e-01 : f32
    %8 = vector.broadcast %cst : f32 to vector<8x256xf32>
    %9 = arith.mulf %8, %4 : vector<8x256xf32>
    %10 = math.tanh %9 : vector<8x256xf32>
    %cst_6 = arith.constant 5.000000e-01 : f32
    %11 = vector.broadcast %cst_6 : f32 to vector<8x256xf32>
    %12 = arith.mulf %11, %10 : vector<8x256xf32>
    %cst_7 = arith.constant 5.000000e-01 : f32
    %13 = vector.broadcast %cst_7 : f32 to vector<8x256xf32>
    %14 = arith.addf %13, %12 : vector<8x256xf32>
    %cst_8 = arith.constant 0.000000e+00 : f32
    %15 = vector.broadcast %cst_8 : f32 to vector<8x256xf32>
    %16 = arith.maximumf %4, %15 : vector<8x256xf32>
    %17 = math.absf %10 : vector<8x256xf32>
    %cst_9 = arith.constant 5.000000e-01 : f32
    %18 = vector.broadcast %cst_9 : f32 to vector<8x256xf32>
    %19 = arith.mulf %18, %17 : vector<8x256xf32>
    %cst_10 = arith.constant 5.000000e-01 : f32
    %20 = vector.broadcast %cst_10 : f32 to vector<8x256xf32>
    %21 = arith.addf %20, %19 : vector<8x256xf32>
    %22 = math.log %21 : vector<8x256xf32>
    %23 = arith.subf %16, %22 : vector<8x256xf32>
    %24 = arith.truncf %14 : vector<8x256xf32> to vector<8x256xbf16>
    %c0_11 = arith.constant 0 : index
    %c0_12 = arith.constant 0 : index
    %25 = vector.load %arg8[%c0_11, %c0_12] : memref<17x256xbf16, #tpu.memory_space<vmem>>, vector<8x256xbf16>
    tpu.vector_store %arg8[%c0_11, %c0_12], %24 {strides = array<i32>} : memref<17x256xbf16, #tpu.memory_space<vmem>>, vector<8x256xbf16>,
    %26 = arith.truncf %23 : vector<8x256xf32> to vector<8x256xbf16>
    %c8 = arith.constant 8 : index
    %c0_13 = arith.constant 0 : index
    %27 = vector.load %arg8[%c8, %c0_13] : memref<17x256xbf16, #tpu.memory_space<vmem>>, vector<8x256xbf16>
    tpu.vector_store %arg8[%c8, %c0_13], %26 {strides = array<i32>} : memref<17x256xbf16, #tpu.memory_space<vmem>>, vector<8x256xbf16>,
    %c0_14 = arith.constant 0 : index
    %c0_15 = arith.constant 0 : index
    %28 = vector.load %arg9[%c0_14, %c0_15] : memref<17x5xf32, #tpu.memory_space<vmem>>, vector<17x5xf32>
    %c0_16 = arith.constant 0 : index
    %c0_17 = arith.constant 0 : index
    %29 = vector.load %arg8[%c0_16, %c0_17] : memref<17x256xbf16, #tpu.memory_space<vmem>>, vector<17x256xbf16>
    %cst_18 = arith.constant dense<0.000000e+00> : vector<17x5xf32>
    %30 = tpu.matmul %29, %7, %cst_18 {dimension_numbers = #tpu.dot_dimension_numbers<[1], [1], [0], [0], [0, 0, 1, 0], [], []>} : vector<17x256xbf16>, vector<5x256xbf16>, vector<17x5xf32> -> vector<17x5xf32>
    %31 = arith.addf %28, %30 : vector<17x5xf32>
    %c0_19 = arith.constant 0 : index
    %c0_20 = arith.constant 0 : index
    %32 = vector.load %arg9[%c0_19, %c0_20] : memref<17x5xf32, #tpu.memory_space<vmem>>, vector<17x5xf32>
    tpu.vector_store %arg9[%c0_19, %c0_20], %31 {strides = array<i32>} : memref<17x5xf32, #tpu.memory_space<vmem>>, vector<17x5xf32>,
    %c0_21 = arith.constant 0 : index
    %c0_22 = arith.constant 0 : index
    %33 = vector.load %arg10[%c0_21, %c0_22] : memref<8x5xf32, #tpu.memory_space<vmem>>, vector<8x5xf32>
    %34 = arith.truncf %4 : vector<8x256xf32> to vector<8x256xbf16>
    %cst_23 = arith.constant dense<0.000000e+00> : vector<8x5xf32>
    %35 = tpu.matmul %34, %7, %cst_23 {dimension_numbers = #tpu.dot_dimension_numbers<[1], [1], [0], [0], [0, 0, 1, 0], [], []>} : vector<8x256xbf16>, vector<5x256xbf16>, vector<8x5xf32> -> vector<8x5xf32>
    %36 = arith.addf %33, %35 : vector<8x5xf32>
    %c0_24 = arith.constant 0 : index
    %c0_25 = arith.constant 0 : index
    %37 = vector.load %arg10[%c0_24, %c0_25] : memref<8x5xf32, #tpu.memory_space<vmem>>, vector<8x5xf32>
    tpu.vector_store %arg10[%c0_24, %c0_25], %36 {strides = array<i32>} : memref<8x5xf32, #tpu.memory_space<vmem>>, vector<8x5xf32>,
    %c0_i32_26 = arith.constant 0 : i32
    %38 = arith.cmpi eq, %arg2, %c0_i32_26 : i32
    %39 = arith.extui %38 : i1 to i32
    %c0_i32_27 = arith.constant 0 : i32
    %40 = arith.cmpi ne, %39, %c0_i32_27 : i32
    scf.if %40 {
      %c0_28 = arith.constant 0 : index
      %c0_29 = arith.constant 0 : index
      %41 = vector.load %arg9[%c0_28, %c0_29] : memref<17x5xf32, #tpu.memory_space<vmem>>, vector<8x4xf32>
      %c0_30 = arith.constant 0 : index
      %c4 = arith.constant 4 : index
      %42 = vector.load %arg9[%c0_30, %c4] : memref<17x5xf32, #tpu.memory_space<vmem>>, vector<8x1xf32>
      %c8_31 = arith.constant 8 : index
      %c4_32 = arith.constant 4 : index
      %43 = vector.load %arg9[%c8_31, %c4_32] : memref<17x5xf32, #tpu.memory_space<vmem>>, vector<8x1xf32>
      %c16 = arith.constant 16 : index
      %c0_33 = arith.constant 0 : index
      %44 = vector.load %arg9[%c16, %c0_33] : memref<17x5xf32, #tpu.memory_space<vmem>>, vector<1x4xf32>
      %c0_34 = arith.constant 0 : index
      %c0_35 = arith.constant 0 : index
      %45 = vector.load %arg10[%c0_34, %c0_35] : memref<8x5xf32, #tpu.memory_space<vmem>>, vector<8x4xf32>
      %46 = vector.broadcast %43 : vector<8x1xf32> to vector<8x4xf32>
      %47 = arith.subf %46, %45 : vector<8x4xf32>
      %cst_36 = arith.constant 3.906250e-03 : f32
      %48 = vector.broadcast %cst_36 : f32 to vector<8x4xf32>
      %49 = arith.mulf %47, %48 : vector<8x4xf32>
      %cst_37 = arith.constant 2.000000e+00 : f32
      %50 = vector.broadcast %cst_37 : f32 to vector<8x4xf32>
      %51 = arith.mulf %50, %41 : vector<8x4xf32>
      %cst_38 = arith.constant 1.000000e+00 : f32
      %52 = vector.broadcast %cst_38 : f32 to vector<8x4xf32>
      %53 = arith.addf %51, %52 : vector<8x4xf32>
      %54 = vector.broadcast %42 : vector<8x1xf32> to vector<8x4xf32>
      %55 = vector.broadcast %44 : vector<1x4xf32> to vector<8x4xf32>
      %56 = arith.addf %54, %55 : vector<8x4xf32>
      %cst_39 = arith.constant 1.000000e+00 : f32
      %57 = vector.broadcast %cst_39 : f32 to vector<8x4xf32>
      %58 = arith.addf %56, %57 : vector<8x4xf32>
      %59 = arith.divf %53, %58 : vector<8x4xf32>
      %cst_40 = arith.constant 1.000000e+00 : f32
      %60 = vector.broadcast %cst_40 : f32 to vector<8x4xf32>
      %61 = arith.subf %60, %59 : vector<8x4xf32>
      %c0_41 = arith.constant 0 : index
      %c0_42 = arith.constant 0 : index
      %c0_43 = arith.constant 0 : index
      %62 = vector.load %arg3[%c0_41, %c0_42, %c0_43] : memref<1x8x5xf32, #tpu.memory_space<vmem>>, vector<1x8x5xf32>
      %63 = vector.shape_cast %62 : vector<1x8x5xf32> to vector<8x5xf32>
      %c0_44 = arith.constant 0 : index
      %c0_45 = arith.constant 0 : index
      %c0_46 = arith.constant 0 : index
      %64 = vector.load %arg4[%c0_44, %c0_45, %c0_46] : memref<1x4x5xf32, #tpu.memory_space<vmem>>, vector<1x4x5xf32>
      %65 = vector.shape_cast %64 : vector<1x4x5xf32> to vector<4x5xf32>
      %cst_47 = arith.constant dense<0xFF800000> : vector<8xf32>
      %66 = vector.multi_reduction <maximumf>, %63, %cst_47 [1] : vector<8x5xf32> to vector<8xf32>
      %67 = vector.shape_cast %66 : vector<8xf32> to vector<8x1xf32>
      %68 = vector.broadcast %67 : vector<8x1xf32> to vector<8x5xf32>
      %69 = arith.subf %63, %68 : vector<8x5xf32>
      %70 = math.exp %69 : vector<8x5xf32>
      %cst_48 = arith.constant dense<0.000000e+00> : vector<8xf32>
      %71 = vector.multi_reduction <add>, %70, %cst_48 [1] : vector<8x5xf32> to vector<8xf32>
      %72 = vector.shape_cast %71 : vector<8xf32> to vector<8x1xf32>
      %73 = vector.broadcast %72 : vector<8x1xf32> to vector<8x5xf32>
      %74 = arith.divf %70, %73 : vector<8x5xf32>
      %cst_49 = arith.constant dense<0.000000e+00> : vector<8x4xf32>
      %75 = tpu.matmul %74, %65, %cst_49 {dimension_numbers = #tpu.dot_dimension_numbers<[1], [1], [0], [0], [0, 0, 1, 0], [], []>} : vector<8x5xf32>, vector<4x5xf32>, vector<8x4xf32> -> vector<8x4xf32>
      %cst_50 = arith.constant 0.000000e+00 : f32
      %76 = vector.broadcast %cst_50 : f32 to vector<8x4xf32>
      %77 = arith.subf %76, %75 : vector<8x4xf32>
      %cst_51 = arith.constant 1.000000e+00 : f32
      %78 = vector.broadcast %cst_51 : f32 to vector<8x4xf32>
      %79 = arith.mulf %78, %77 : vector<8x4xf32>
      %cst_52 = arith.constant 1.000000e+00 : f32
      %80 = vector.broadcast %cst_52 : f32 to vector<8x4xf32>
      %81 = arith.mulf %80, %49 : vector<8x4xf32>
      %82 = arith.addf %79, %81 : vector<8x4xf32>
      %cst_53 = arith.constant 1.000000e+00 : f32
      %83 = vector.broadcast %cst_53 : f32 to vector<8x4xf32>
      %84 = arith.mulf %83, %61 : vector<8x4xf32>
      %85 = arith.addf %82, %84 : vector<8x4xf32>
      %c0_54 = arith.constant 0 : index
      %c0_55 = arith.constant 0 : index
      %c0_56 = arith.constant 0 : index
      %86 = vector.load %arg7[%c0_54, %c0_55, %c0_56] : memref<1x8x4xf32, #tpu.memory_space<vmem>>, vector<1x8x4xf32>
      %87 = vector.shape_cast %86 : vector<1x8x4xf32> to vector<8x4xf32>
      %88 = vector.shape_cast %85 : vector<8x4xf32> to vector<1x8x4xf32>
      tpu.vector_store %arg7[%c0_54, %c0_55, %c0_56], %88 {strides = array<i32>} : memref<1x8x4xf32, #tpu.memory_space<vmem>>, vector<1x8x4xf32>,
    } else {
    }
    return
  }
  func.func @transform_0(%arg0: i32, %arg1: i32, %arg2: i32) -> (i32, i32, i32) {
    %c0_i32 = arith.constant 0 : i32
    %c0_i32_0 = arith.constant 0 : i32
    return %arg0, %arg1, %c0_i32 : i32, i32, i32
  }
  func.func @transform_1(%arg0: i32, %arg1: i32, %arg2: i32) -> (i32, i32, i32) {
    %c0_i32 = arith.constant 0 : i32
    %c0_i32_0 = arith.constant 0 : i32
    %c0_i32_1 = arith.constant 0 : i32
    return %arg0, %c0_i32, %c0_i32_0 : i32, i32, i32
  }
  func.func @transform_2(%arg0: i32, %arg1: i32, %arg2: i32) -> (i32, i32, i32) {
    %c0_i32 = arith.constant 0 : i32
    return %arg0, %arg1, %arg2 : i32, i32, i32
  }
  func.func @transform_3(%arg0: i32, %arg1: i32, %arg2: i32) -> (i32, i32, i32) {
    %c0_i32 = arith.constant 0 : i32
    %c0_i32_0 = arith.constant 0 : i32
    return %arg0, %c0_i32, %arg2 : i32, i32, i32
  }
  func.func @transform_4(%arg0: i32, %arg1: i32, %arg2: i32) -> (i32, i32, i32) {
    %c0_i32 = arith.constant 0 : i32
    %c0_i32_0 = arith.constant 0 : i32
    return %arg0, %arg1, %c0_i32 : i32, i32, i32
  }
}

</mosaic_0001>

<llo_original>
// kernel: tpu_custom_call.1
$region0: #{tpu_custom_call.1}
  #allocation0 [shape = 'u32[]', space=smem, size = 0x4, offset = 0x4, fixed_abs, tag = 'smem constant byte address 0x4 - core index']
  #allocation1 [shape = 'u32[72,128]{1,0:T(1,128)}', space=vmem, size = 0x9000, scoped, tag = 'internal scratch']
  #allocation2 [shape = 'bf16[17,256]{1,0:T(8,128)(2,1)}', space=vmem, size = 0x3000, scoped, tag = 'scratch operand']
  #allocation3 [shape = 'f32[17,5]{1,0:T(8,128)}', space=vmem, size = 0x3000, scoped, tag = 'scratch operand']
  #allocation4 [shape = 'f32[8,5]{1,0:T(8,128)}', space=vmem, size = 0x1000, scoped, tag = 'scratch operand']
  %s0 = inlined_call_operand.vmem [shape: f32[2,8,5], index: 0, kind: input, shape index: {}]
  %s1 = inlined_call_operand.vmem [shape: f32[2,4,5], index: 1, kind: input, shape index: {}]
  %s2 = inlined_call_operand.vmem [shape: f32[2,8,256], index: 2, kind: input, shape index: {}]
  %s3 = inlined_call_operand.vmem [shape: f32[2,5,256], index: 3, kind: input, shape index: {}]
  %s4 = inlined_call_operand.vmem [shape: f32[2,8,4], index: 4, kind: output, shape index: {}]
  %s5 = sld [smem:[#allocation0]]
  $region57: #{tpu_custom_call.1} parent=0
    _
  %s7 = ssub.s32 1, %s5
  %s8 = scalar_select 0, %s7, %s5
  loop: start=0, step=1, limit=4
  $region2: #{tpu_custom_call.1} parent=0 // loop_pre_header
    _
  $region3: #{tpu_custom_call.1} parent=0 // loop_header
    %s10 = sphi 0, %s14
    %p11 = scmp.ge.s32.totalorder %s10, 4
    %s17 = sphi 0, %s36
    %s18 = sphi 0, %s32
    %s19 = sphi 0, %s28
    %s20 = sphi 0, %s17
    %s21 = sphi 0, %s18
    %s22 = sphi 0, %s19
    %s23 = sphi 0, %s20
    %s24 = sphi 0, %s21
    %s25 = sphi 0, %s22
    %s41 = sphi 0, %s43
    %s44 = sphi 0, %s41
    %s45 = sphi 0, %s44
    %s61 = sphi 0, %s45
    %s67 = sphi 0, %s69
    %s70 = sphi 0, %s67
    %s71 = sphi 0, %s70
    %s87 = sphi 0, %s71
    %s97 = sphi 0, %s99
    %s100 = sphi 0, %s97
    %s101 = sphi 0, %s100
    %s117 = sphi 0, %s101
    %s125 = sphi 0, %s127
    %s128 = sphi 0, %s125
    %s129 = sphi 0, %s128
    %s145 = sphi 0, %s129
    %s153 = sphi 0, %s155
    %s156 = sphi 0, %s153
    %s157 = sphi 0, %s156
    %s173 = sphi 0, %s157
  $region4: #{tpu_custom_call.1} parent=0 // loop_header_branch
    %13 = sbr.rel (%p11) target = $region8
  $region5: #{tpu_custom_call.1} parent=0 // loop_body
    %s15 = ssub.s32 %s10, 1
    %s16 = ssub.s32 %s10, 2
    %s26 = sadd.s32 1, %s19
    %p27 = scmp.ge.s32.totalorder %s26, 1
    %s28 = scalar_select %p27, 0, %s26
    %s29 = sadd.s32 1, %s18
    %s30 = scalar_select %p27, %s29, %s18
    %p31 = scmp.ge.s32.totalorder %s30, 1
    %s32 = scalar_select %p31, 0, %s30
    %s33 = sadd.s32 1, %s17
    %s34 = scalar_select %p31, %s33, %s17
    %p35 = scmp.ge.s32.totalorder %s34, 2
    %s36 = scalar_select %p35, 0, %s34
    %s37 = ssub.s32 %s17, %s36
    %s38 = ssub.s32 %s18, %s32
    %s39 = sor.u32 %s37, %s38
    %p40 = scmp.eq.s32.totalorder %s39, 0
    %s42 = sadd.s32 %s41, 1
    %s43 = scalar_select %p40, %s41, %s42
    %p46 = pneg %p40
    %p47 = scmp.eq.s32.totalorder %s10, 1
    %p48 = por %p46, %p47
    %p49 = scmp.ne.s32.totalorder %s41, %s44
    %p50 = scmp.eq.s32.totalorder %s10, 0
    %p51 = por %p49, %p50
    %p52 = scmp.ne.s32.totalorder %s41, %s44
    %p53 = scmp.eq.s32.totalorder %s15, 1
    %p54 = por %p52, %p53
    %p55 = scmp.ne.s32.totalorder %s44, %s45
    %p56 = scmp.eq.s32.totalorder %s15, 0
    %p57 = por %p55, %p56
    %p58 = scmp.ne.s32.totalorder %s44, %s45
    %p59 = scmp.eq.s32.totalorder %s16, 1
    %p60 = por %p58, %p59
    %p62 = scmp.ne.s32.totalorder %s45, %s61
    %p63 = scmp.eq.s32.totalorder %s16, 0
    %p64 = por %p62, %p63
    %s65 = ssub.s32 %s17, %s36
    %p66 = scmp.eq.s32.totalorder %s65, 0
    %s68 = sadd.s32 %s67, 1
    %s69 = scalar_select %p66, %s67, %s68
    %p72 = pneg %p66
    %p73 = scmp.eq.s32.totalorder %s10, 1
    %p74 = por %p72, %p73
    %p75 = scmp.ne.s32.totalorder %s67, %s70
    %p76 = scmp.eq.s32.totalorder %s10, 0
    %p77 = por %p75, %p76
    %p78 = scmp.ne.s32.totalorder %s67, %s70
    %p79 = scmp.eq.s32.totalorder %s15, 1
    %p80 = por %p78, %p79
    %p81 = scmp.ne.s32.totalorder %s70, %s71
    %p82 = scmp.eq.s32.totalorder %s15, 0
    %p83 = por %p81, %p82
    %p84 = scmp.ne.s32.totalorder %s70, %s71
    %p85 = scmp.eq.s32.totalorder %s16, 1
    %p86 = por %p84, %p85
    %p88 = scmp.ne.s32.totalorder %s71, %s87
    %p89 = scmp.eq.s32.totalorder %s16, 0
    %p90 = por %p88, %p89
    %s91 = ssub.s32 %s17, %s36
    %s92 = ssub.s32 %s18, %s32
    %s93 = sor.u32 %s91, %s92
    %s94 = ssub.s32 %s19, %s28
    %s95 = sor.u32 %s93, %s94
    %p96 = scmp.eq.s32.totalorder %s95, 0
    %s98 = sadd.s32 %s97, 1
    %s99 = scalar_select %p96, %s97, %s98
    %p102 = pneg %p96
    %p103 = scmp.eq.s32.totalorder %s10, 1
    %p104 = por %p102, %p103
    %p105 = scmp.ne.s32.totalorder %s97, %s100
    %p106 = scmp.eq.s32.totalorder %s10, 0
    %p107 = por %p105, %p106
    %p108 = scmp.ne.s32.totalorder %s97, %s100
    %p109 = scmp.eq.s32.totalorder %s15, 1
    %p110 = por %p108, %p109
    %p111 = scmp.ne.s32.totalorder %s100, %s101
    %p112 = scmp.eq.s32.totalorder %s15, 0
    %p113 = por %p111, %p112
    %p114 = scmp.ne.s32.totalorder %s100, %s101
    %p115 = scmp.eq.s32.totalorder %s16, 1
    %p116 = por %p114, %p115
    %p118 = scmp.ne.s32.totalorder %s101, %s117
    %p119 = scmp.eq.s32.totalorder %s16, 0
    %p120 = por %p118, %p119
    %s121 = ssub.s32 %s17, %s36
    %s122 = ssub.s32 %s19, %s28
    %s123 = sor.u32 %s121, %s122
    %p124 = scmp.eq.s32.totalorder %s123, 0
    %s126 = sadd.s32 %s125, 1
    %s127 = scalar_select %p124, %s125, %s126
    %p130 = pneg %p124
    %p131 = scmp.eq.s32.totalorder %s10, 1
    %p132 = por %p130, %p131
    %p133 = scmp.ne.s32.totalorder %s125, %s128
    %p134 = scmp.eq.s32.totalorder %s10, 0
    %p135 = por %p133, %p134
    %p136 = scmp.ne.s32.totalorder %s125, %s128
    %p137 = scmp.eq.s32.totalorder %s15, 1
    %p138 = por %p136, %p137
    %p139 = scmp.ne.s32.totalorder %s128, %s129
    %p140 = scmp.eq.s32.totalorder %s15, 0
    %p141 = por %p139, %p140
    %p142 = scmp.ne.s32.totalorder %s128, %s129
    %p143 = scmp.eq.s32.totalorder %s16, 1
    %p144 = por %p142, %p143
    %p146 = scmp.ne.s32.totalorder %s129, %s145
    %p147 = scmp.eq.s32.totalorder %s16, 0
    %p148 = por %p146, %p147
    %s149 = ssub.s32 %s17, %s36
    %s150 = ssub.s32 %s18, %s32
    %s151 = sor.u32 %s149, %s150
    %p152 = scmp.eq.s32.totalorder %s151, 0
    %s154 = sadd.s32 %s153, 1
    %s155 = scalar_select %p152, %s153, %s154
    %p158 = pneg %p152
    %p159 = scmp.eq.s32.totalorder %s10, 1
    %p160 = por %p158, %p159
    %p161 = scmp.ne.s32.totalorder %s153, %s156
    %p162 = scmp.eq.s32.totalorder %s10, 0
    %p163 = por %p161, %p162
    %p164 = scmp.ne.s32.totalorder %s153, %s156
    %p165 = scmp.eq.s32.totalorder %s15, 1
    %p166 = por %p164, %p165
    %p167 = scmp.ne.s32.totalorder %s156, %s157
    %p168 = scmp.eq.s32.totalorder %s15, 0
    %p169 = por %p167, %p168
    %p170 = scmp.ne.s32.totalorder %s156, %s157
    %p171 = scmp.eq.s32.totalorder %s16, 1
    %p172 = por %p170, %p171
    %p174 = scmp.ne.s32.totalorder %s157, %s173
    %p175 = scmp.eq.s32.totalorder %s16, 0
    %p176 = por %p174, %p175
    %p177 = scmp.le.s32.totalorder 1, %s10
    %p178 = scmp.lt.s32.totalorder %s10, 3
    %p179 = pnand %p177, %p178
    %p180 = pneg %p179
    // Predicated region
    $region9: #{tpu_custom_call.1} parent=5 // pred_check
      _
    $region10: #{tpu_custom_call.1} parent=5 // pred_check_branch
      %182 = sbr.rel (%p179) target = $region12
    $region11: #{tpu_custom_call.1} parent=5 // pred_region
      %s183 = ssub.s32 %s10, 1
    $region12: #{tpu_custom_call.1} parent=5 // pred_fallthru
      _
    %p184 = scmp.lt.s32.totalorder %s10, 2
    // Predicated region
    $region13: #{tpu_custom_call.1} parent=5 // pred_check
      %p185 = pneg %p184
    $region14: #{tpu_custom_call.1} parent=5 // pred_check_branch
      %187 = sbr.rel (%p185) target = $region16
    $region15: #{tpu_custom_call.1} parent=5 // pred_region
      // Predicated region
      $region17: #{tpu_custom_call.1} parent=15 // pred_check
        %p188 = pneg %p51
      $region18: #{tpu_custom_call.1} parent=15 // pred_check_branch
        %190 = sbr.rel (%p188) target = $region20
      $region19: #{tpu_custom_call.1} parent=15 // pred_region
        %p191 = scmp.lt.s32.totalorder %s17, 1
        %s192 = scalar_select %p191, %s17, 1
        %p193 = scmp.lt.s32.totalorder %s18, 0
        %s194 = scalar_select %p193, %s18, 0
        %s195 = sadd.s32 %s194, %s192
        %s196 = smul.addr %s195, 8
        %s197 = scalar_lea.vmem %s0, %s196
      $region20: #{tpu_custom_call.1} parent=15 // pred_fallthru
        _
      // Predicated region
      $region21: #{tpu_custom_call.1} parent=15 // pred_check
        %p198 = pneg %p77
      $region22: #{tpu_custom_call.1} parent=15 // pred_check_branch
        %200 = sbr.rel (%p198) target = $region24
      $region23: #{tpu_custom_call.1} parent=15 // pred_region
        %p201 = scmp.lt.s32.totalorder %s17, 1
        %s202 = scalar_select %p201, %s17, 1
        %s203 = smul.addr %s202, 4
        %s204 = scalar_lea.vmem %s1, %s203
      $region24: #{tpu_custom_call.1} parent=15 // pred_fallthru
        _
      // Predicated region
      $region25: #{tpu_custom_call.1} parent=15 // pred_check
        %p205 = pneg %p107
      $region26: #{tpu_custom_call.1} parent=15 // pred_check_branch
        %207 = sbr.rel (%p205) target = $region28
      $region27: #{tpu_custom_call.1} parent=15 // pred_region
        %s208 = smul.u32 2, %s19
        %p209 = scmp.lt.s32.totalorder %s17, 1
        %s210 = scalar_select %p209, %s17, 1
        %p211 = scmp.lt.s32.totalorder %s18, 0
        %s212 = scalar_select %p211, %s18, 0
        %p213 = scmp.lt.s32.totalorder %s208, 1
        %s214 = scalar_select %p213, %s208, 1
        %s215 = smul.addr %s212, 2
        %s216 = sadd.s32 %s214, %s215
        %s217 = smul.addr %s210, 2
        %s218 = sadd.s32 %s216, %s217
        %s219 = smul.addr %s218, 8
        %s220 = scalar_lea.vmem %s2, %s219
        %s221 = smul.u32 2, %s19
      $region28: #{tpu_custom_call.1} parent=15 // pred_fallthru
        _
      // Predicated region
      $region29: #{tpu_custom_call.1} parent=15 // pred_check
        %p222 = pneg %p135
      $region30: #{tpu_custom_call.1} parent=15 // pred_check_branch
        %224 = sbr.rel (%p222) target = $region32
      $region31: #{tpu_custom_call.1} parent=15 // pred_region
        %s225 = smul.u32 2, %s19
        %p226 = scmp.lt.s32.totalorder %s17, 1
        %s227 = scalar_select %p226, %s17, 1
        %p228 = scmp.lt.s32.totalorder %s225, 1
        %s229 = scalar_select %p228, %s225, 1
        %s230 = smul.addr %s227, 2
        %s231 = sadd.s32 %s229, %s230
        %s232 = smul.addr %s231, 8
        %s233 = scalar_lea.vmem %s3, %s232
        %s234 = smul.u32 2, %s19
      $region32: #{tpu_custom_call.1} parent=15 // pred_fallthru
        _
    $region16: #{tpu_custom_call.1} parent=5 // pred_fallthru
      _
    %p235 = scmp.le.s32.totalorder 1, %s10
    %p236 = scmp.lt.s32.totalorder %s10, 3
    %p237 = pnand %p235, %p236
    %p238 = pneg %p237
    // Predicated region
    $region33: #{tpu_custom_call.1} parent=5 // pred_check
      _
    $region34: #{tpu_custom_call.1} parent=5 // pred_check_branch
      %240 = sbr.rel (%p237) target = $region36
    $region35: #{tpu_custom_call.1} parent=5 // pred_region
      %s241 = ssub.s32 %s10, 1
      %p242 = scmp.lt.s32.totalorder %s20, 1
      %s243 = scalar_select %p242, %s20, 1
      %p244 = scmp.lt.s32.totalorder %s21, 0
      %s245 = scalar_select %p244, %s21, 0
      %s246 = sadd.s32 %s245, %s243
      %s247 = smul.addr %s246, 8
      %s248 = scalar_lea.vmem %s0, %s247
      %p249 = pneg %p57
      %p250 = pneg %p54
      %p251 = scmp.lt.s32.totalorder %s20, 1
      %s252 = scalar_select %p251, %s20, 1
      %s253 = smul.addr %s252, 4
      %s254 = scalar_lea.vmem %s1, %s253
      %p255 = pneg %p83
      %p256 = pneg %p80
      %s257 = smul.u32 2, %s22
      %p258 = scmp.lt.s32.totalorder %s20, 1
      %s259 = scalar_select %p258, %s20, 1
      %p260 = scmp.lt.s32.totalorder %s21, 0
      %s261 = scalar_select %p260, %s21, 0
      %p262 = scmp.lt.s32.totalorder %s257, 1
      %s263 = scalar_select %p262, %s257, 1
      %s264 = smul.addr %s261, 2
      %s265 = sadd.s32 %s263, %s264
      %s266 = smul.addr %s259, 2
      %s267 = sadd.s32 %s265, %s266
      %s268 = smul.addr %s267, 8
      %s269 = scalar_lea.vmem %s2, %s268
      %p270 = pneg %p113
      %p271 = pneg %p110
      %s272 = smul.u32 2, %s22
      %p273 = scmp.lt.s32.totalorder %s20, 1
      %s274 = scalar_select %p273, %s20, 1
      %p275 = scmp.lt.s32.totalorder %s272, 1
      %s276 = scalar_select %p275, %s272, 1
      %s277 = smul.addr %s274, 2
      %s278 = sadd.s32 %s276, %s277
      %s279 = smul.addr %s278, 8
      %s280 = scalar_lea.vmem %s3, %s279
      %p281 = pneg %p141
      %p282 = pneg %p138
      %p283 = pneg %p169
      %p284 = pneg %p166
      %p285 = scmp.lt.s32.totalorder %s20, 1
      %s286 = scalar_select %p285, %s20, 1
      %p287 = scmp.lt.s32.totalorder %s21, 0
      %s288 = scalar_select %p287, %s21, 0
      %s289 = sadd.s32 %s288, %s286
      %s290 = smul.addr %s289, 8
      %s291 = scalar_lea.vmem %s4, %s290
      %p292 = scmp.lt.s32.totalorder %s20, 1
      %s293 = scalar_select %p292, %s20, 1
      %p294 = scmp.lt.s32.totalorder %s21, 0
      %s295 = scalar_select %p294, %s21, 0
      %s296 = sadd.s32 %s295, %s293
      %s297 = smul.addr %s296, 8
      %s298 = scalar_lea.vmem %s0, %s297
      %p299 = scmp.lt.s32.totalorder %s20, 1
      %s300 = scalar_select %p299, %s20, 1
      %s301 = smul.addr %s300, 4
      %s302 = scalar_lea.vmem %s1, %s301
      %s303 = smul.u32 2, %s22
      %p304 = scmp.lt.s32.totalorder %s20, 1
      %s305 = scalar_select %p304, %s20, 1
      %p306 = scmp.lt.s32.totalorder %s21, 0
      %s307 = scalar_select %p306, %s21, 0
      %p308 = scmp.lt.s32.totalorder %s303, 1
      %s309 = scalar_select %p308, %s303, 1
      %s310 = smul.addr %s307, 2
      %s311 = sadd.s32 %s309, %s310
      %s312 = smul.addr %s305, 2
      %s313 = sadd.s32 %s311, %s312
      %s314 = smul.addr %s313, 8
      %s315 = scalar_lea.vmem %s2, %s314
      %s316 = smul.u32 2, %s22
      %s317 = smul.u32 2, %s22
      %p318 = scmp.lt.s32.totalorder %s20, 1
      %s319 = scalar_select %p318, %s20, 1
      %p320 = scmp.lt.s32.totalorder %s317, 1
      %s321 = scalar_select %p320, %s317, 1
      %s322 = smul.addr %s319, 2
      %s323 = sadd.s32 %s321, %s322
      %s324 = smul.addr %s323, 8
      %s325 = scalar_lea.vmem %s3, %s324
      %s326 = smul.u32 2, %s22
      %p327 = scmp.lt.s32.totalorder %s20, 1
      %s328 = scalar_select %p327, %s20, 1
      %p329 = scmp.lt.s32.totalorder %s21, 0
      %s330 = scalar_select %p329, %s21, 0
      %s331 = sadd.s32 %s330, %s328
      %s332 = smul.addr %s331, 8
      %s333 = scalar_lea.vmem %s4, %s332
      %p336 = scmp.eq.s32.totalorder %s22, 0
      // Predicated region
      $region37: #{tpu_custom_call.1} parent=35 // pred_check
        %p337 = pneg %p336
      $region38: #{tpu_custom_call.1} parent=35 // pred_check_branch
        %339 = sbr.rel (%p337) target = $region40
      $region39: #{tpu_custom_call.1} parent=35 // pred_region
        %vm340 = vcmask 39936
        %341 = vst.msk [vmem:[#allocation3] sm:$0xff] %vm340, 0.0
        %342 = vst.msk [vmem:[#allocation3 + $0x8] sm:$0xff] %vm340, 0.0
        %vm343 = vcmask 32768
        %344 = vst.msk [vmem:[#allocation3 + $0x10] sm:$0x1] %vm343, 0.0
        %345 = vst.msk [vmem:[#allocation4] sm:$0xff] %vm340, 0.0
        %vm346 = vcmask 1040384
        %vm347 = vsmask.f32 256
        %vm348 = vmand %vm346, %vm347
        %vm349 = vcmask 1044484
        %vm350 = vsmask.f32 4352
        %vm351 = vmand %vm349, %vm350
        %vm352 = vmor %vm351, %vm348
        %v353 = vld [vmem:[#allocation2 + $0x10] sm:$0x11]
        %v354 = vsel %vm352, 1065369472, %v353
        %355 = vst [vmem:[#allocation2 + $0x10] sm:$0x11] %v354
      $region40: #{tpu_custom_call.1} parent=35 // pred_fallthru
        _
      %v356 = vld [vmem:[%s315] sm:$0xff]
      %v357 = vld [vmem:[%s315 + $0x8] sm:$0xff]
      %v358 = vld [vmem:[%s325] sm:$0x1f]
      %v359 = vld [vmem:[%s325 + $0x8] sm:$0x1f]
      %v360 = vpack.c.bf16 %v358, %v358
      %v361 = vpack.c.bf16 %v359, %v359
      %v362 = vmul.f32 %v356, 0.5
      %v363 = vmul.f32 %v357, 0.5
      %v364 = vtanh.pop %v362
      %v365 = vtanh.pop %v363
      %v366 = vmul.f32 %v364, 0.5
      %v367 = vmul.f32 %v365, 0.5
      %v368 = vadd.f32 %v366, 0.5
      %v369 = vadd.f32 %v367, 0.5
      %v370 = vmax.f32 %v356, 0.0
      %v371 = vmax.f32 %v357, 0.0
      %v372 = vand.u32 2147483647, %v364
      %v373 = vand.u32 2147483647, %v365
      %v374 = vmul.f32 %v372, 0.5
      %v375 = vmul.f32 %v373, 0.5
      %v376 = vadd.f32 %v374, 0.5
      %v377 = vadd.f32 %v375, 0.5
      %v378 = vlog2.pop %v376
      %v379 = vmul.f32 %v378, 0.6931472
      %v380 = vlog2.pop %v377
      %v381 = vmul.f32 %v380, 0.6931472
      %v382 = vsub.f32 %v370, %v379
      %v383 = vsub.f32 %v371, %v381
      %v384 = vpack.c.bf16 %v369, %v368
      %385 = vst [vmem:[#allocation2] sm:$0xff] %v384
      %v386 = vpack.c.bf16 %v383, %v382
      %387 = vst [vmem:[#allocation2 + $0x8] sm:$0xff] %v386
      %v388 = vld [vmem:[#allocation3] sm:$0xff]
      %v389 = vld [vmem:[#allocation3 + $0x8] sm:$0xff]
      %v390 = vld [vmem:[#allocation3 + $0x10] sm:$0x1]
      %v391 = vld [vmem:[#allocation2] sm:$0xff]
      %v392 = vld [vmem:[#allocation2 + $0x8] sm:$0xff]
      %v393 = vld [vmem:[#allocation2 + $0x10] sm:$0x11]
      %v397 = vunpack.c.l.b16 %v391
      %v398 = vunpack.c.h.b16 %v391
      %v399 = vunpack.c.l.b16 %v392
      %v400 = vunpack.c.h.b16 %v392
      %v401 = vunpack.c.l.b16 %v393
      %v402 = vunpack.c.h.b16 %v393
      %v403 = vpack.c.b16 %v399, %v397
      %v404 = vpack.c.b16 %v400, %v398
      %v405 = vpack.c.b16 %v401, %v401
      %v406 = vpack.c.b16 %v402, %v402
      %411 = vmatpush.bf16.xpose.msra.mxu0 0
      %412 = vmatpush.bf16.xpose.msra.mxu0 0
      %413 = vmatpush.bf16.xpose.msra.mxu0 0
      %414 = vmatpush.bf16.xpose.msra.mxu0 0
      %415 = vmatpush.bf16.xpose.msra.mxu0 0
      %416 = vmatpush.bf16.xpose.msra.mxu0 0
      %417 = vmatpush.bf16.xpose.msra.mxu0 0
      %418 = vmatpush.bf16.xpose.msra.mxu0 %v360
      %419 = vmatmul.bf16.gmra.mxu0 %v403
      %v420 = vpop.f32.mrf.mxu0
      %v421 = vadd.f32 0.0, %v420
      %v422 = vpop.f32.mrf.mxu0
      %v423 = vadd.f32 0.0, %v422
      %424 = vmatmul.bf16.gmra.mxu0 %v405
      %v425 = vpop.f32.mrf.mxu0
      %v426 = vadd.f32 0.0, %v425
      %v427 = vpop.f32.mrf.mxu0
      %428 = vdwg.mxu0
      %429 = vmatpush.bf16.xpose.msra.mxu0 0
      %430 = vmatpush.bf16.xpose.msra.mxu0 0
      %431 = vmatpush.bf16.xpose.msra.mxu0 0
      %432 = vmatpush.bf16.xpose.msra.mxu0 0
      %433 = vmatpush.bf16.xpose.msra.mxu0 0
      %434 = vmatpush.bf16.xpose.msra.mxu0 0
      %435 = vmatpush.bf16.xpose.msra.mxu0 0
      %436 = vmatpush.bf16.xpose.msra.mxu0 %v361
      %437 = vmatmul.bf16.gmra.mxu0 %v404
      %v438 = vpop.f32.mrf.mxu0
      %v439 = vadd.f32 %v421, %v438
      %v440 = vpop.f32.mrf.mxu0
      %v441 = vadd.f32 %v423, %v440
      %442 = vmatmul.bf16.gmra.mxu0 %v406
      %v443 = vpop.f32.mrf.mxu0
      %v444 = vadd.f32 %v426, %v443
      %v445 = vpop.f32.mrf.mxu0
      %446 = vdwg.mxu0
      %v447 = vadd.f32 %v388, %v439
      %v448 = vadd.f32 %v389, %v441
      %v449 = vadd.f32 %v390, %v444
      %vm450 = vcmask 39936
      %451 = vst.msk [vmem:[#allocation3] sm:$0xff] %vm450, %v447
      %452 = vst.msk [vmem:[#allocation3 + $0x8] sm:$0xff] %vm450, %v448
      %vm453 = vcmask 32768
      %454 = vst.msk [vmem:[#allocation3 + $0x10] sm:$0x1] %vm453, %v449
      %v455 = vld [vmem:[#allocation4] sm:$0xff]
      %v456 = vpack.c.bf16 %v356, %v356
      %v457 = vpack.c.bf16 %v357, %v357
      %458 = vmatpush.bf16.xpose.msra.mxu0 0
      %459 = vmatpush.bf16.xpose.msra.mxu0 0
      %460 = vmatpush.bf16.xpose.msra.mxu0 0
      %461 = vmatpush.bf16.xpose.msra.mxu0 0
      %462 = vmatpush.bf16.xpose.msra.mxu0 0
      %463 = vmatpush.bf16.xpose.msra.mxu0 0
      %464 = vmatpush.bf16.xpose.msra.mxu0 0
      %465 = vmatpush.bf16.xpose.msra.mxu0 %v360
      %466 = vmatmul.bf16.gmra.mxu0 %v456
      %v467 = vpop.f32.mrf.mxu0
      %v468 = vadd.f32 0.0, %v467
      %v469 = vpop.f32.mrf.mxu0
      %470 = vdwg.mxu0
      %471 = vmatpush.bf16.xpose.msra.mxu0 0
      %472 = vmatpush.bf16.xpose.msra.mxu0 0
      %473 = vmatpush.bf16.xpose.msra.mxu0 0
      %474 = vmatpush.bf16.xpose.msra.mxu0 0
      %475 = vmatpush.bf16.xpose.msra.mxu0 0
      %476 = vmatpush.bf16.xpose.msra.mxu0 0
      %477 = vmatpush.bf16.xpose.msra.mxu0 0
      %478 = vmatpush.bf16.xpose.msra.mxu0 %v361
      %479 = vmatmul.bf16.gmra.mxu0 %v457
      %v480 = vpop.f32.mrf.mxu0
      %v481 = vadd.f32 %v468, %v480
      %v482 = vpop.f32.mrf.mxu0
      %483 = vdwg.mxu0
      %v484 = vadd.f32 %v455, %v481
      %485 = vst.msk [vmem:[#allocation4] sm:$0xff] %vm450, %v484
      // Predicated region
      $region41: #{tpu_custom_call.1} parent=35 // pred_check
        %p486 = pneg %p336
      $region42: #{tpu_custom_call.1} parent=35 // pred_check_branch
        %488 = sbr.rel (%p486) target = $region44
      $region43: #{tpu_custom_call.1} parent=35 // pred_region
        %v489 = vld [vmem:[#allocation3] sm:$0xff]
        %v490 = vld [vmem:[#allocation3 + $0x8] sm:$0xff]
        %v491 = vld [vmem:[#allocation3 + $0x10] sm:$0x1]
        %v492 = vld [vmem:[#allocation4] sm:$0xff]
        %494 = vset.pattern.permute.xlu0 4
        %495 = vperm.xlu0 %494, %v490
        %v496 = vpop.permute.xlu0 %495
        %v498 = vsub.f32 %v496, %v492
        %v499 = vmul.f32 %v498, 0.00390625
        %v500 = vmul.f32 %v489, 2.0
        %v501 = vadd.f32 %v500, 1.0
        %503 = vset.pattern.permute.xlu0 4
        %504 = vperm.xlu0 %503, %v489
        %v505 = vpop.permute.xlu0 %504
        %v507 = vperm.slane %v491, 0
        %v508 = vadd.f32 %v505, %v507
        %v509 = vadd.f32 %v508, 1.0
        %v510 = vrcp.pop %v509
        %v511 = vmul.f32 %v509, %v510
        %v512 = vsub.f32 1.0, %v511
        %v513 = vmul.f32 %v510, %v512
        %v514 = vadd.f32 %v510, %v513
        %vm515 = vweird.f32 %v509
        %vm516 = vweird.f32 %v510
        %vm517 = vmor %vm515, %vm516
        %v518 = vsel %vm517, %v510, %v514
        %v519 = vand.u32 2147483647, %v509
        %vm520 = vcmp.eq.f32.partialorder %v519, 8.507059e+37
        %v521 = vand.u32 %v509, 2147483648
        %v522 = vor.u32 1.1754944e-38, %v521
        %v523 = vsel %vm520, %v522, %v518
        %v524 = vmul.f32 %v501, %v523
        %v525 = vsub.f32 1.0, %v524
        %v526 = vld [vmem:[%s298] sm:$0xff]
        %v527 = vld [vmem:[%s302] sm:$0xf]
        %v528 = vsel %vm450, %v526, -inf
        %529 = vmax.xlane.f32.xlu0 %v528
        %v530 = vpop.xlane.xlu0 %529
        %v531 = vsub.f32 %v526, %v530
        %v532 = vmul.f32 %v531, 1.442695
        %v533 = vpow.pop %v532
        %v534 = vsel %vm450, %v533, 0.0
        %535 = vadd.xlane.f32.xlu0 %v534
        %v536 = vpop.xlane.xlu0 %535
        %v537 = vrcp.pop %v536
        %v538 = vmul.f32 %v536, %v537
        %v539 = vsub.f32 1.0, %v538
        %v540 = vmul.f32 %v537, %v539
        %v541 = vadd.f32 %v537, %v540
        %vm542 = vweird.f32 %v536
        %vm543 = vweird.f32 %v537
        %vm544 = vmor %vm542, %vm543
        %v545 = vsel %vm544, %v537, %v541
        %v546 = vand.u32 2147483647, %v536
        %vm547 = vcmp.eq.f32.partialorder %v546, 8.507059e+37
        %v548 = vand.u32 %v536, 2147483648
        %v549 = vor.u32 1.1754944e-38, %v548
        %v550 = vsel %vm547, %v549, %v545
        %v551 = vmul.f32 %v533, %v550
        %v553 = vsel %vm450, %v551, 0
        %v556 = vsel %vm450, %v527, 0
        %558 = vmatpush.xpose.msra.mxu0 0.0
        %559 = vmatpush.xpose.msra.mxu0 0.0
        %560 = vmatpush.xpose.msra.mxu0 0.0
        %561 = vmatpush.xpose.msra.mxu0 0.0
        %562 = vmatpush.xpose.msra.mxu0 0.0
        %563 = vmatpush.xpose.msra.mxu0 0.0
        %564 = vmatpush.xpose.msra.mxu0 0.0
        %565 = vmatpush.xpose.msra.mxu0 0.0
        %566 = vmatpush.xpose.msra.mxu0 0.0
        %567 = vmatpush.xpose.msra.mxu0 0.0
        %568 = vmatpush.xpose.msra.mxu0 0.0
        %569 = vmatpush.xpose.msra.mxu0 0.0
        %570 = vmatpush.xpose.msra.mxu0 0.0
        %571 = vmatpush.xpose.msra.mxu0 0.0
        %572 = vmatpush.xpose.msra.mxu0 0.0
        %573 = vmatpush.xpose.msra.mxu0 %v556
        %574 = vmatmul.f32.gmra.mxu0 %v553
        %v575 = vpop.f32.mrf.mxu0
        %v576 = vadd.f32 0.0, %v575
        %577 = vdwg.mxu0
        %v578 = vsub.f32 0.0, %v576
        %v579 = vadd.f32 %v578, %v499
        %v580 = vadd.f32 %v579, %v525
        %vm581 = vcmask 31744
        %582 = vst.msk [vmem:[%s333] sm:$0xff] %vm581, %v580
      $region44: #{tpu_custom_call.1} parent=35 // pred_fallthru
        _
      %p583 = scmp.lt.s32.totalorder %s20, 1
      %s584 = scalar_select %p583, %s20, 1
      %p585 = scmp.lt.s32.totalorder %s21, 0
      %s586 = scalar_select %p585, %s21, 0
      %s587 = sadd.s32 %s586, %s584
      %s588 = smul.addr %s587, 8
      %s589 = scalar_lea.vmem %s4, %s588
      // Predicated region
      $region45: #{tpu_custom_call.1} parent=35 // pred_check
        %p590 = pneg %p166
      $region46: #{tpu_custom_call.1} parent=35 // pred_check_branch
        %592 = sbr.rel (%p590) target = $region48
      $region47: #{tpu_custom_call.1} parent=35 // pred_region
        _
      $region48: #{tpu_custom_call.1} parent=35 // pred_fallthru
        _
    $region36: #{tpu_custom_call.1} parent=5 // pred_fallthru
      _
    %p593 = scmp.le.s32.totalorder 2, %s10
    // Predicated region
    $region49: #{tpu_custom_call.1} parent=5 // pred_check
      %p594 = pneg %p593
    $region50: #{tpu_custom_call.1} parent=5 // pred_check_branch
      %596 = sbr.rel (%p594) target = $region52
    $region51: #{tpu_custom_call.1} parent=5 // pred_region
      %s597 = ssub.s32 %s10, 2
      // Predicated region
      $region53: #{tpu_custom_call.1} parent=51 // pred_check
        %p598 = pneg %p172
      $region54: #{tpu_custom_call.1} parent=51 // pred_check_branch
        %600 = sbr.rel (%p598) target = $region56
      $region55: #{tpu_custom_call.1} parent=51 // pred_region
        %p601 = scmp.lt.s32.totalorder %s23, 1
        %s602 = scalar_select %p601, %s23, 1
        %p603 = scmp.lt.s32.totalorder %s24, 0
        %s604 = scalar_select %p603, %s24, 0
        %s605 = sadd.s32 %s604, %s602
        %s606 = smul.addr %s605, 8
        %s607 = scalar_lea.vmem %s4, %s606
      $region56: #{tpu_custom_call.1} parent=51 // pred_fallthru
        _
    $region52: #{tpu_custom_call.1} parent=5 // pred_fallthru
      _
  $region6: #{tpu_custom_call.1} parent=0 // loop_footer
    %s14 = sadd.s32 1, %s10
  $region7: #{tpu_custom_call.1} parent=0 // loop_footer_branch
    %9 = sbr.rel target = $region3
  $region8: #{tpu_custom_call.1} parent=0 // loop_exit
    _

</llo_original>
